<compile_context>
chip_gen: v7x
topology: tpu7x:2x2x1
jax: 0.10.0
libtpu: 0.0.40
codegen_flags: <defaults>
</compile_context>

<pallas_src>
import math

import jax
import jax.numpy as jnp
from jax.experimental import pallas as pl
from jax.experimental.pallas import tpu as pltpu


def _dyt_kernel(alpha_ref, gamma_ref, beta_ref, x_ref, o_ref):
    # alpha_ref: SMEM (1, 1) f32 scalar.
    # gamma_ref / beta_ref: VMEM (1, De) f32, resident across the grid.
    # x_ref / o_ref: VMEM (block_rows, De) in the model dtype.
    alpha = alpha_ref[0, 0]
    x = x_ref[...].astype(jnp.float32)
    # TODO(synk): on v7x with bf16 I/O the single f32 EUP slot for tanh may
    # become the binding unit at ~3.2 TB/s HBM; switch to a bf16 tanh there if
    # bundle dumps show EUP saturated.
    o_ref[...] = (gamma_ref[...] * jnp.tanh(alpha * x)
                  + beta_ref[...]).astype(o_ref.dtype)


def _vmem_capacity_bytes():
    try:
        return int(pltpu.get_tpu_info().vmem_capacity_bytes)
    except Exception:
        return 64 << 20  # conservative default (v7x per-core VMEM)


def _dyt_2d(x3, alpha_f, gamma_e, beta_e, *, block_rows=None):
    """Apply DynamicTanh to a (R, De) array (De ideally a multiple of 128)."""
    R, De = x3.shape
    itemsize = jnp.dtype(x3.dtype).itemsize
    sublane = {4: 8, 2: 16, 1: 32}.get(itemsize, 8)
    row_bytes = De * itemsize

    vmem_cap = _vmem_capacity_bytes()
    vmem_budget = int(0.7 * vmem_cap)        # leave compiler headroom
    target_block_bytes = vmem_cap // 8       # ~16 MiB on 128 MiB parts, ~8 MiB on v7x

    br = int(block_rows) if block_rows is not None else max(
        target_block_bytes // row_bytes, 1)
    # Round to the dtype's sublane packing (keeps the (8,128) tiling rule).
    br = max((br // sublane) * sublane, sublane)
    # Keep the 2x(in+out) double-buffered blocks inside the VMEM budget
    # (also guards an oversized caller-supplied block_rows).
    max_br = max((vmem_budget // (4 * row_bytes)) // sublane * sublane, sublane)
    br = min(br, max_br)
    # Keep the grid >= ~8 steps when there is enough work (v7x dual-TC balance).
    min_grid = 8
    br_grid = max(pl.cdiv(pl.cdiv(R, min_grid), sublane) * sublane, sublane)
    br = min(br, br_grid)
    block_rows = int(br)

    grid = (pl.cdiv(R, block_rows),)
    block_bytes = block_rows * row_bytes
    vmem_limit = int(min(max(4 * block_bytes + 8 * De * 4 + (2 << 20), 8 << 20),
                         vmem_budget))

    return pl.pallas_call(
        _dyt_kernel,
        out_shape=jax.ShapeDtypeStruct((R, De), x3.dtype),
        grid=grid,
        in_specs=[
            # scalar alpha lives in SMEM
            pl.BlockSpec(memory_space=pltpu.MemorySpace.SMEM),
            # per-feature affine params, resident across the whole grid
            pl.BlockSpec((1, De), lambda i: (0, 0)),
            pl.BlockSpec((1, De), lambda i: (0, 0)),
            # row-tiled input; partial tail block is masked by Pallas
            pl.BlockSpec((block_rows, De), lambda i: (i, 0)),
        ],
        out_specs=pl.BlockSpec((block_rows, De), lambda i: (i, 0)),
        compiler_params=pltpu.CompilerParams(
            dimension_semantics=("parallel",),
            vmem_limit_bytes=vmem_limit),
        # NOTE: if profiling on v5e/v6e shows exposed DMA at block boundaries,
        # add pipeline_mode=pl.Buffered(3) on the x / out BlockSpecs.
    )(alpha_f, gamma_e, beta_e, x3)


def dynamic_tanh(x, alpha, gamma, beta, *, block_rows=None):
    """y = gamma * tanh(alpha * x) + beta, x: [..., D] (e.g. [B, S, n_embd])."""
    *lead, D = x.shape
    rows = 1
    for d in lead:
        rows *= d
    x2 = x.reshape(rows, D)

    alpha_f = jnp.asarray(alpha, jnp.float32).reshape(1, 1)
    gamma_f = jnp.asarray(gamma, jnp.float32).reshape(D)
    beta_f = jnp.asarray(beta, jnp.float32).reshape(D)

    # Lane densification: fold `rep` rows into one 128-multiple lane row so
    # in-kernel stores are unmasked.  rep = lcm(D, 128) / D; for awkward D
    # (rep > 32) fall back to the full-extent (possibly masked) lane dim.
    rep = 128 // math.gcd(D, 128)
    if rep > 32:
        rep = 1
    De = D * rep
    gamma_e = jnp.tile(gamma_f, rep).reshape(1, De)  # gamma_e[j] = gamma[j % D]
    beta_e = jnp.tile(beta_f, rep).reshape(1, De)

    def run_folded(xb):  # xb: (n, D) with n % rep == 0; the fold is a free reshape
        n = xb.shape[0]
        out = _dyt_2d(xb.reshape(n // rep, De), alpha_f, gamma_e, beta_e,
                      block_rows=block_rows)
        return out.reshape(n, D)

    tail = rows % rep
    if tail == 0:
        out2 = run_folded(x2)
    else:
        # Aligned bulk through the folded kernel; the <= rep-1 leftover rows
        # via a tiny plain-XLA epilogue (no whole-tensor pad copy).
        bulk = rows - tail
        xt = x2[bulk:].astype(jnp.float32)
        out_tail = (gamma_f * jnp.tanh(alpha_f[0, 0] * xt)
                    + beta_f).astype(x.dtype)
        if bulk == 0:
            out2 = out_tail
        else:
            out2 = jnp.concatenate([run_folded(x2[:bulk]), out_tail], axis=0)

    return out2.reshape(x.shape)


def _reference(x, alpha, gamma, beta):
    xf = x.astype(jnp.float32)
    y = gamma.astype(jnp.float32) * jnp.tanh(alpha[0].astype(jnp.float32) * xf)
    return (y + beta.astype(jnp.float32)).astype(x.dtype)


if __name__ == "__main__":
    key = jax.random.PRNGKey(0)
    init_alpha = 2.0
    alpha = jnp.ones((1,), dtype=jnp.float32) * init_alpha

    # Case 1: module-spec shapes (batch=2, seq=8, n_embd=32) -> lane-folding,
    # rows divisible by rep, no pads, Pallas-masked tail.
    batch, seq, n_embd = 2, 8, 32
    x = jax.random.normal(key, (batch, seq, n_embd), dtype=jnp.float32)
    gamma = jnp.ones((n_embd,), dtype=jnp.float32)
    beta = jnp.zeros((n_embd,), dtype=jnp.float32)
    y = jax.block_until_ready(dynamic_tanh(x, alpha, gamma, beta))
    assert y.shape == (batch, seq, n_embd)
    assert jnp.allclose(y, _reference(x, alpha, gamma, beta),
                        atol=1e-5, rtol=1e-5)

    # Case 2: ragged rows + D=48 (lcm folding: De=384, plus tiny XLA epilogue).
    x2 = jax.random.normal(jax.random.PRNGKey(1), (2, 5, 48), dtype=jnp.float32)
    g2 = jax.random.normal(jax.random.PRNGKey(2), (48,), dtype=jnp.float32)
    b2 = jax.random.normal(jax.random.PRNGKey(3), (48,), dtype=jnp.float32)
    y2 = jax.block_until_ready(dynamic_tanh(x2, alpha, g2, b2))
    assert jnp.allclose(y2, _reference(x2, alpha, g2, b2),
                        atol=1e-5, rtol=1e-5)

    # Case 3: bf16 I/O, D already a multiple of 128 (rep == 1 path).
    x3 = jax.random.normal(jax.random.PRNGKey(4), (2, 8, 256),
                           dtype=jnp.bfloat16)
    g3 = jnp.ones((256,), dtype=jnp.float32)
    b3 = jnp.zeros((256,), dtype=jnp.float32)
    y3 = jax.block_until_ready(dynamic_tanh(x3, alpha, g3, b3))
    assert y3.dtype == jnp.bfloat16
    assert jnp.allclose(y3.astype(jnp.float32),
                        _reference(x3, alpha, g3, b3).astype(jnp.float32),
                        atol=1e-2, rtol=1e-2)

    print("KERNEL_OK")
</pallas_src>

<mosaic_0001>
module attributes {stable_mosaic.version = 11 : i64} {
  func.func @_dyt_kernel(%arg0: i32, %arg1: memref<1x1xf32, #tpu.memory_space<smem>>, %arg2: memref<1x128xf32, #tpu.memory_space<vmem>>, %arg3: memref<1x128xf32, #tpu.memory_space<vmem>>, %arg4: memref<8x128xf32, #tpu.memory_space<vmem>>, %arg5: memref<8x128xf32, #tpu.memory_space<vmem>>) attributes {dimension_semantics = [#tpu.dimension_semantics<parallel>], iteration_bounds = array<i64: 1>, scalar_prefetch = 0 : i64, scratch_operands = 0 : i64, tpu.core_type = #tpu.core_type<tc>, window_params = [{transform_indices = @transform_0, window_bounds = array<i64: 1, 1>}, {pipeline_mode = #tpu.pipeline_mode<synchronous>, transform_indices = @transform_1, window_bounds = array<i64: 1, 128>}, {pipeline_mode = #tpu.pipeline_mode<synchronous>, transform_indices = @transform_2, window_bounds = array<i64: 1, 128>}, {transform_indices = @transform_3, window_bounds = array<i64: 8, 128>}, {transform_indices = @transform_4, window_bounds = array<i64: 8, 128>}]} {
    %c0 = arith.constant 0 : index
    %c0_0 = arith.constant 0 : index
    %0 = memref.load %arg1[%c0, %c0_0] : memref<1x1xf32, #tpu.memory_space<smem>>
    %c0_1 = arith.constant 0 : index
    %c0_2 = arith.constant 0 : index
    %1 = vector.load %arg4[%c0_1, %c0_2] : memref<8x128xf32, #tpu.memory_space<vmem>>, vector<8x128xf32>
    %c0_3 = arith.constant 0 : index
    %c0_4 = arith.constant 0 : index
    %2 = vector.load %arg2[%c0_3, %c0_4] : memref<1x128xf32, #tpu.memory_space<vmem>>, vector<1x128xf32>
    %3 = vector.broadcast %0 : f32 to vector<8x128xf32>
    %4 = arith.mulf %3, %1 : vector<8x128xf32>
    %5 = math.tanh %4 : vector<8x128xf32>
    %6 = vector.broadcast %2 : vector<1x128xf32> to vector<8x128xf32>
    %7 = arith.mulf %6, %5 : vector<8x128xf32>
    %c0_5 = arith.constant 0 : index
    %c0_6 = arith.constant 0 : index
    %8 = vector.load %arg3[%c0_5, %c0_6] : memref<1x128xf32, #tpu.memory_space<vmem>>, vector<1x128xf32>
    %9 = vector.broadcast %8 : vector<1x128xf32> to vector<8x128xf32>
    %10 = arith.addf %7, %9 : vector<8x128xf32>
    %c0_7 = arith.constant 0 : index
    %c0_8 = arith.constant 0 : index
    %11 = vector.load %arg5[%c0_7, %c0_8] : memref<8x128xf32, #tpu.memory_space<vmem>>, vector<8x128xf32>
    tpu.vector_store %arg5[%c0_7, %c0_8], %10 {strides = array<i32>} : memref<8x128xf32, #tpu.memory_space<vmem>>, vector<8x128xf32>,
    return
  }
  func.func @transform_0(%arg0: i32) -> (i32, i32) {
    %c0_i32 = arith.constant 0 : i32
    %c0_i32_0 = arith.constant 0 : i32
    %c0_i32_1 = arith.constant 0 : i32
    return %c0_i32, %c0_i32_0 : i32, i32
  }
  func.func @transform_1(%arg0: i32) -> (i32, i32) {
    %c0_i32 = arith.constant 0 : i32
    %c0_i32_0 = arith.constant 0 : i32
    %c0_i32_1 = arith.constant 0 : i32
    return %c0_i32, %c0_i32_0 : i32, i32
  }
  func.func @transform_2(%arg0: i32) -> (i32, i32) {
    %c0_i32 = arith.constant 0 : i32
    %c0_i32_0 = arith.constant 0 : i32
    %c0_i32_1 = arith.constant 0 : i32
    return %c0_i32, %c0_i32_0 : i32, i32
  }
  func.func @transform_3(%arg0: i32) -> (i32, i32) {
    %c0_i32 = arith.constant 0 : i32
    %c0_i32_0 = arith.constant 0 : i32
    return %arg0, %c0_i32 : i32, i32
  }
  func.func @transform_4(%arg0: i32) -> (i32, i32) {
    %c0_i32 = arith.constant 0 : i32
    %c0_i32_0 = arith.constant 0 : i32
    return %arg0, %c0_i32 : i32, i32
  }
}

</mosaic_0001>

<llo_original>
// kernel: tpu_custom_call.1
$region0: #{tpu_custom_call.1}
  #allocation0 [shape = 'u32[]', space=smem, size = 0x4, offset = 0x4, fixed_abs, tag = 'smem constant byte address 0x4 - core index']
  #allocation1 [shape = 'u32[144,128]{1,0:T(1,128)}', space=vmem, size = 0x12000, scoped, tag = 'internal scratch']
  #allocation2 [shape = 'f32[1,1]{1,0:T(1,128)S(6)}', space=smem, size = 0x200, scoped, tag = 'scoped memory for tpu_custom_call.1']
  %s0 = inlined_call_operand.<no memory space> [shape: f32[1,1], index: 0, kind: input, shape index: {}]
  %s1 = inlined_call_operand.vmem [shape: f32[1,128], index: 1, kind: input, shape index: {}]
  %s2 = inlined_call_operand.vmem [shape: f32[1,128], index: 2, kind: input, shape index: {}]
  %s3 = inlined_call_operand.vmem [shape: f32[4,128], index: 3, kind: input, shape index: {}]
  %s4 = inlined_call_operand.hbm [shape: f32[4,128], index: 4, kind: output, shape index: {}]
  %s5 = sld [smem:[#allocation0]]
  $region26: #{tpu_custom_call.1} parent=0
    _
  %s7 = ssub.s32 1, %s5
  %s8 = scalar_select 0, %s7, %s5
  %9 = sst [smem:[#allocation2]] %s0
  $region1: #{tpu_custom_call.1} parent=0
    #allocation3 [shape = 'u8[4096]{0}', space=vmem, size = 0x1000, scoped, tag = 'output window, operand 0, single buffered']
    #allocation4 [shape = 's32[1]{0}', space=sflag, size = 0x4, scoped, tag = 'scoped memory for tpu_custom_call.1']
    %10 = vsyncpa [#allocation4], 0
    // Predicated region
    $region2: #{tpu_custom_call.1} parent=1 // pred_check
      _
    $region3: #{tpu_custom_call.1} parent=1 // pred_check_branch
      %12 = sbr.rel (0) target = $region5
    $region4: #{tpu_custom_call.1} parent=1 // pred_region
      _
    $region5: #{tpu_custom_call.1} parent=1 // pred_fallthru
      _
    // Predicated region
    $region6: #{tpu_custom_call.1} parent=1 // pred_check
      _
    $region7: #{tpu_custom_call.1} parent=1 // pred_check_branch
      %14 = sbr.rel (0) target = $region9
    $region8: #{tpu_custom_call.1} parent=1 // pred_region
      _
    $region9: #{tpu_custom_call.1} parent=1 // pred_fallthru
      _
    // Predicated region
    $region10: #{tpu_custom_call.1} parent=1 // pred_check
      _
    $region11: #{tpu_custom_call.1} parent=1 // pred_check_branch
      %16 = sbr.rel (0) target = $region13
    $region12: #{tpu_custom_call.1} parent=1 // pred_region
      _
    $region13: #{tpu_custom_call.1} parent=1 // pred_fallthru
      _
    // Predicated region
    $region14: #{tpu_custom_call.1} parent=1 // pred_check
      _
    $region15: #{tpu_custom_call.1} parent=1 // pred_check_branch
      %18 = sbr.rel (0) target = $region17
    $region16: #{tpu_custom_call.1} parent=1 // pred_region
      _
    $region17: #{tpu_custom_call.1} parent=1 // pred_fallthru
      _
    %s19 = sld [smem:[#allocation2]]
    %v20 = vld [vmem:[%s3] sm:$0xff]
    %v21 = vld [vmem:[%s1] sm:$0x1]
    %v22 = vstv %s19
    %v23 = vmul.f32 %v22, %v20
    %v24 = vtanh.pop %v23
    %v26 = vlaneseq
    %v27 = vshrl.u32 %v26, 7
    %v28 = vsub.s32 0, %v27
    %v29 = vrot.slane %v21, %v28
    %v31 = vmul.f32 %v29, %v24
    %v32 = vld [vmem:[%s2] sm:$0x1]
    %v34 = vlaneseq
    %v35 = vshrl.u32 %v34, 7
    %v36 = vsub.s32 0, %v35
    %v37 = vrot.slane %v32, %v36
    %v39 = vadd.f32 %v31, %v37
    %40 = vst [vmem:[#allocation3] sm:$0xff] %v39
    // Predicated region
    $region18: #{tpu_custom_call.1} parent=1 // pred_check
      _
    $region19: #{tpu_custom_call.1} parent=1 // pred_check_branch
      %42 = sbr.rel (0) target = $region21
    $region20: #{tpu_custom_call.1} parent=1 // pred_region
      %s44 = ssub.s32 128, 64
      %45 = vsyncadd [#allocation4], %s44
      %s46 = sshll.u32 [#allocation3], 4
      %s47 = int_to_ptr.vmem [resolvable:$true] %s46
      %52 = dma.vmem_to_hbm [thread:$0]  %s47, 64, %s4, [#allocation4], 64, 64, 4
    $region21: #{tpu_custom_call.1} parent=1 // pred_fallthru
      _
    // Predicated region
    $region22: #{tpu_custom_call.1} parent=1 // pred_check
      _
    $region23: #{tpu_custom_call.1} parent=1 // pred_check_branch
      %54 = sbr.rel (0) target = $region25
    $region24: #{tpu_custom_call.1} parent=1 // pred_region
      %55 = dma.done [#allocation4], 128
    $region25: #{tpu_custom_call.1} parent=1 // pred_fallthru
      _
    %56 = vsyncpa [#allocation4], 1

</llo_original>
